<compile_context>
chip_gen: v6e
topology: v6e:2x2x1
jax: 0.10.0
libtpu: 0.0.40
codegen_flags: <defaults>
</compile_context>

<pallas_src>
import math

import jax
import jax.numpy as jnp
from jax.experimental import pallas as pl
from jax.experimental.pallas import tpu as pltpu

SEQUENCE = "sequence"


def _round_up(x, m):
    return ((x + m - 1) // m) * m


def stamp_kernel(hseq_ref, mask_ref, attnw_ref, attnv_ref, mlpw_ref, mlpb_ref,
                 embt_ref, scores_ref, ms_ref, sel_ref):
    """One (batch-tile, item-tile) grid step.

    hseq_ref : (Bb, T, D)  bf16   session embeddings (D lane-padded)
    mask_ref : (Bb, T)     f32    validity mask
    attnw_ref: (D, 3D)     bf16   [w1^T | w2^T | w3^T]
    attnv_ref: (2, D)      f32    row0 = w0, row1 = b_a
    mlpw_ref : (D, 2D)     bf16   [mlp_a.W^T | mlp_b.W^T]
    mlpb_ref : (2, D)      f32    row0 = mlp_a.b, row1 = mlp_b.b
    embt_ref : (D, block_n) bf16  item-embedding tile (transposed)
    scores_ref: (Bb, block_n) f32
    ms_ref   : (Bb, D)     f32    masked-mean output (written once per batch tile)
    sel_ref  : (Bb, D)     f32    VMEM scratch holding hs*ht across item tiles
    """
    nj = pl.program_id(1)
    Bb, T, D = hseq_ref.shape

    # The attention / MLP part only depends on the batch tile: compute it once (nj == 0)
    # and keep the gated "select" vector in VMEM scratch for all item tiles.
    @pl.when(nj == 0)
    def _():
        h = hseq_ref[...]                                   # (Bb, T, D) bf16
        hf = h.astype(jnp.float32)
        m = mask_ref[...]                                   # (Bb, T) f32

        # forward(): last hidden state + masked mean over time.
        last_h = hf[:, T - 1, :]                            # (Bb, D)
        denom = jnp.maximum(jnp.sum(m, axis=1, keepdims=True), 1.0)   # guard all-zero mask
        ms = jnp.sum(hf * m[:, :, None], axis=1) / denom    # (Bb, D)

        w1t = attnw_ref[:, 0:D]
        w2t = attnw_ref[:, D:2 * D]
        w3t = attnw_ref[:, 2 * D:3 * D]
        w0 = attnv_ref[0:1, :]                              # (1, D)
        b_a = attnv_ref[1:2, :]                             # (1, D)
        cd = w1t.dtype

        # count_alpha(): additive attention over the session (batched).
        h2 = hf.reshape(Bb * T, D).astype(cd)
        res_ctx = jnp.dot(h2, w1t,
                          preferred_element_type=jnp.float32).reshape(Bb, T, D)
        res_asp = jnp.dot(last_h.astype(cd), w2t, preferred_element_type=jnp.float32)
        res_out = jnp.dot(ms.astype(cd), w3t, preferred_element_type=jnp.float32)
        res_sum = res_ctx + (res_asp + res_out + b_a)[:, None, :]      # (Bb, T, D)
        alpha = jnp.sum(jax.nn.sigmoid(res_sum) * w0, axis=-1)         # (Bb, T)

        # compute_scores() front half: weighted sum, two tanh MLPs, gate.
        vec = jnp.sum(alpha[:, :, None] * hf, axis=1)                  # (Bb, D)
        ma = vec + ms
        wat = mlpw_ref[:, 0:D]
        wbt = mlpw_ref[:, D:2 * D]
        hs = jnp.tanh(jnp.dot(ma.astype(cd), wat, preferred_element_type=jnp.float32)
                      + mlpb_ref[0:1, :])
        ht = jnp.tanh(jnp.dot(last_h.astype(cd), wbt, preferred_element_type=jnp.float32)
                      + mlpb_ref[1:2, :])

        sel_ref[...] = hs * ht
        ms_ref[...] = ms

    # Scores for this item tile: (Bb, D) @ (D, block_n) on the MXU.
    scores_ref[...] = jnp.dot(sel_ref[...].astype(embt_ref.dtype), embt_ref[...],
                              preferred_element_type=jnp.float32)


def stamp_pallas(ids, mask, params, *, max_block_b=128, max_block_n=2048,
                 compute_dtype=jnp.bfloat16):
    emb = params["emb"].astype(jnp.float32)                 # (N, D)
    B, T = ids.shape
    N, D = emb.shape

    # Tile / padding geometry: lane-align D, sublane-align the batch tile, tile N.
    D_pad = _round_up(D, 128)
    Bb = min(max_block_b, _round_up(B, 8))
    B_pad = _round_up(B, Bb)
    block_n = min(max_block_n, _round_up(N, 128))
    N_pad = _round_up(N, block_n)

    def pad_to(x, shape):
        return jnp.pad(x, [(0, s - d) for s, d in zip(shape, x.shape)])

    # Glue: embedding lookup (gather) + parameter layout plumbing (all zero-padded,
    # so padded lanes contribute exactly 0 to alpha / ms / select / scores).
    emb_d = pad_to(emb, (N, D_pad))
    h_seq = jnp.take(emb_d, ids, axis=0)                    # (B, T, D_pad) f32
    h_seq = pad_to(h_seq, (B_pad, T, D_pad)).astype(compute_dtype)
    mask_f = pad_to(mask.astype(jnp.float32), (B_pad, T))

    w1t = pad_to(params["w1"].T, (D_pad, D_pad))
    w2t = pad_to(params["w2"].T, (D_pad, D_pad))
    w3t = pad_to(params["w3"].T, (D_pad, D_pad))
    attn_w = jnp.concatenate([w1t, w2t, w3t], axis=1).astype(compute_dtype)   # (D, 3D)
    attn_v = jnp.stack([pad_to(params["w0"][0], (D_pad,)),
                        pad_to(params["b_a"], (D_pad,))], axis=0).astype(jnp.float32)
    wat = pad_to(params["mlp_a_w"].T, (D_pad, D_pad))
    wbt = pad_to(params["mlp_b_w"].T, (D_pad, D_pad))
    mlp_w = jnp.concatenate([wat, wbt], axis=1).astype(compute_dtype)         # (D, 2D)
    mlp_b = jnp.stack([pad_to(params["mlp_a_b"], (D_pad,)),
                       pad_to(params["mlp_b_b"], (D_pad,))], axis=0).astype(jnp.float32)
    embt = pad_to(emb.T, (D_pad, N_pad)).astype(compute_dtype)                # (D, N_pad)

    grid = (B_pad // Bb, N_pad // block_n)

    # Advisory cost hint so XLA schedules the surrounding gather around the kernel.
    flops = (2 * B_pad * D_pad * N_pad            # scores GEMM
             + 2 * B_pad * T * D_pad * D_pad      # w1
             + 4 * B_pad * D_pad * D_pad          # w2 + w3
             + 4 * B_pad * D_pad * D_pad)         # mlp_a + mlp_b
    transcendentals = B_pad * T * D_pad + 2 * B_pad * D_pad
    in_arrays = (h_seq, mask_f, attn_w, attn_v, mlp_w, mlp_b, embt)
    bytes_accessed = int(sum(a.size * a.dtype.itemsize for a in in_arrays)
                         + B_pad * N_pad * 4 + B_pad * D_pad * 4)

    scores, ms = pl.pallas_call(
        stamp_kernel,
        out_shape=(
            jax.ShapeDtypeStruct((B_pad, N_pad), jnp.float32),
            jax.ShapeDtypeStruct((B_pad, D_pad), jnp.float32),
        ),
        grid=grid,
        in_specs=[
            pl.BlockSpec((Bb, T, D_pad), lambda bi, nj: (bi, 0, 0)),   # h_seq batch tile
            pl.BlockSpec((Bb, T), lambda bi, nj: (bi, 0)),             # mask
            pl.BlockSpec((D_pad, 3 * D_pad), lambda bi, nj: (0, 0)),   # [w1|w2|w3]^T
            pl.BlockSpec((2, D_pad), lambda bi, nj: (0, 0)),           # [w0; b_a]
            pl.BlockSpec((D_pad, 2 * D_pad), lambda bi, nj: (0, 0)),   # [mlp_a|mlp_b]^T
            pl.BlockSpec((2, D_pad), lambda bi, nj: (0, 0)),           # MLP biases
            pl.BlockSpec((D_pad, block_n), lambda bi, nj: (0, nj)),    # emb^T item tile
        ],
        out_specs=(
            pl.BlockSpec((Bb, block_n), lambda bi, nj: (bi, nj)),      # scores
            pl.BlockSpec((Bb, D_pad), lambda bi, nj: (bi, 0)),         # ms
        ),
        scratch_shapes=[pltpu.VMEM((Bb, D_pad), jnp.float32)],         # select = hs*ht
        compiler_params=pltpu.CompilerParams(
            dimension_semantics=("parallel", "arbitrary")),
        cost_estimate=pl.CostEstimate(flops=flops,
                                      transcendentals=transcendentals,
                                      bytes_accessed=bytes_accessed),
    )(h_seq, mask_f, attn_w, attn_v, mlp_w, mlp_b, embt)

    # last_h is just the embedding of the last id -> compute exactly in the wrapper.
    last_h = jnp.take(emb, ids[:, -1], axis=0)              # (B, D)
    return scores[:B, :N], last_h, ms[:B, :D]


def stamp_reference(ids, mask, params):
    """Pure-JAX reference mirroring the PyTorch forward() + compute_scores()."""
    emb = params["emb"]
    h_seq = emb[ids]                                              # (B, T, D)
    last_h = h_seq[:, -1, :]
    m = mask.astype(jnp.float32)[:, :, None]
    ms = (h_seq * m).sum(1) / m.sum(1)
    res_ctx = h_seq @ params["w1"].T
    res_asp = (last_h @ params["w2"].T)[:, None, :]
    res_out = (ms @ params["w3"].T)[:, None, :]
    res_sum = res_ctx + res_asp + res_out + params["b_a"]
    alpha = (jax.nn.sigmoid(res_sum) @ params["w0"].T)[..., 0]    # (B, T)
    vec = jnp.einsum("bt,btd->bd", alpha, h_seq)
    ma = vec + ms
    hs = jnp.tanh(ma @ params["mlp_a_w"].T + params["mlp_a_b"])
    ht = jnp.tanh(last_h @ params["mlp_b_w"].T + params["mlp_b_b"])
    select = hs * ht
    scores = select @ emb.T
    return scores, last_h, ms


def init_params(key, n_nodes, dim):
    # Matches STAMP.reset_parameters(): uniform(-stdv, stdv) weights, zero biases / b_a.
    stdv = 1.0 / math.sqrt(dim)
    ks = jax.random.split(key, 7)
    u = lambda k, shape: jax.random.uniform(k, shape, jnp.float32, -stdv, stdv)
    return dict(
        emb=u(ks[0], (n_nodes, dim)),          # nn.Embedding(n_nodes, dim)
        w1=u(ks[1], (dim, dim)),               # nn.Linear(dim, dim, bias=False).weight
        w2=u(ks[2], (dim, dim)),
        w3=u(ks[3], (dim, dim)),
        w0=u(ks[4], (1, dim)),                 # nn.Linear(dim, 1, bias=False).weight
        b_a=jnp.zeros((dim,), jnp.float32),
        mlp_a_w=u(ks[5], (dim, dim)),
        mlp_a_b=jnp.zeros((dim,), jnp.float32),
        mlp_b_w=u(ks[6], (dim, dim)),
        mlp_b_b=jnp.zeros((dim,), jnp.float32),
    )


if __name__ == "__main__":
    B, T, D, N = 2, 8, 32, 128   # batch, max_len, hidden_dim, n_nodes

    key = jax.random.PRNGKey(0)
    k_param, k_ids = jax.random.split(key)
    params = init_params(k_param, N, D)

    ids = jax.random.randint(k_ids, (B, T), 1, N, dtype=jnp.int32)
    mask = jnp.array([[1] * T, [1] * 5 + [0] * (T - 5)], dtype=jnp.int32)

    scores, last_h, ms = stamp_pallas(ids, mask, params)
    jax.block_until_ready((scores, last_h, ms))

    scores_ref, last_h_ref, ms_ref = stamp_reference(ids, mask, params)

    assert scores.shape == (B, N) and last_h.shape == (B, D) and ms.shape == (B, D)
    assert float(jnp.max(jnp.abs(scores - scores_ref))) < 2e-2   # bf16 MXU path
    assert float(jnp.max(jnp.abs(last_h - last_h_ref))) < 1e-5
    assert float(jnp.max(jnp.abs(ms - ms_ref))) < 1e-2

    print("KERNEL_OK")
</pallas_src>

<mosaic_0001>
module attributes {stable_mosaic.version = 11 : i64} {
  func.func @stamp_kernel(%arg0: i32, %arg1: i32, %arg2: memref<8x8x128xbf16, #tpu.memory_space<vmem>>, %arg3: memref<8x8xf32, #tpu.memory_space<vmem>>, %arg4: memref<128x384xbf16, #tpu.memory_space<vmem>>, %arg5: memref<2x128xf32, #tpu.memory_space<vmem>>, %arg6: memref<128x256xbf16, #tpu.memory_space<vmem>>, %arg7: memref<2x128xf32, #tpu.memory_space<vmem>>, %arg8: memref<128x128xbf16, #tpu.memory_space<vmem>>, %arg9: memref<8x128xf32, #tpu.memory_space<vmem>>, %arg10: memref<8x128xf32, #tpu.memory_space<vmem>>, %arg11: memref<8x128xf32, #tpu.memory_space<vmem>>) attributes {dimension_semantics = [#tpu.dimension_semantics<parallel>, #tpu.dimension_semantics<arbitrary>], iteration_bounds = array<i64: 1, 1>, scalar_prefetch = 0 : i64, scratch_operands = 1 : i64, tpu.core_type = #tpu.core_type<tc>, window_params = [{transform_indices = @transform_0, window_bounds = array<i64: 8, 8, 128>}, {transform_indices = @transform_1, window_bounds = array<i64: 8, 8>}, {pipeline_mode = #tpu.pipeline_mode<synchronous>, transform_indices = @transform_2, window_bounds = array<i64: 128, 384>}, {pipeline_mode = #tpu.pipeline_mode<synchronous>, transform_indices = @transform_3, window_bounds = array<i64: 2, 128>}, {pipeline_mode = #tpu.pipeline_mode<synchronous>, transform_indices = @transform_4, window_bounds = array<i64: 128, 256>}, {pipeline_mode = #tpu.pipeline_mode<synchronous>, transform_indices = @transform_5, window_bounds = array<i64: 2, 128>}, {transform_indices = @transform_6, window_bounds = array<i64: 128, 128>}, {transform_indices = @transform_7, window_bounds = array<i64: 8, 128>}, {transform_indices = @transform_8, window_bounds = array<i64: 8, 128>}]} {
    %c0_i32 = arith.constant 0 : i32
    %0 = arith.cmpi eq, %arg1, %c0_i32 : i32
    %1 = arith.extui %0 : i1 to i32
    %c0_i32_0 = arith.constant 0 : i32
    %2 = arith.cmpi ne, %1, %c0_i32_0 : i32
    scf.if %2 {
      %c0_6 = arith.constant 0 : index
      %c0_7 = arith.constant 0 : index
      %c0_8 = arith.constant 0 : index
      %8 = vector.load %arg2[%c0_6, %c0_7, %c0_8] : memref<8x8x128xbf16, #tpu.memory_space<vmem>>, vector<8x8x128xbf16>
      %9 = arith.extf %8 : vector<8x8x128xbf16> to vector<8x8x128xf32>
      %c0_9 = arith.constant 0 : index
      %c0_10 = arith.constant 0 : index
      %10 = vector.load %arg3[%c0_9, %c0_10] : memref<8x8xf32, #tpu.memory_space<vmem>>, vector<8x8xf32>
      %11 = vector.extract_strided_slice %9 {offsets = [0, 7, 0], sizes = [8, 1, 128], strides = [1, 1, 1]} : vector<8x8x128xf32> to vector<8x1x128xf32>
      %12 = vector.shape_cast %11 : vector<8x1x128xf32> to vector<8x128xf32>
      %cst_11 = arith.constant dense<0.000000e+00> : vector<8xf32>
      %13 = vector.multi_reduction <add>, %10, %cst_11 [1] : vector<8x8xf32> to vector<8xf32>
      %14 = vector.shape_cast %13 : vector<8xf32> to vector<8x1xf32>
      %cst_12 = arith.constant 1.000000e+00 : f32
      %15 = vector.broadcast %cst_12 : f32 to vector<8x1xf32>
      %16 = arith.maximumf %14, %15 : vector<8x1xf32>
      %17 = vector.shape_cast %10 : vector<8x8xf32> to vector<8x8x1xf32>
      %18 = vector.broadcast %17 : vector<8x8x1xf32> to vector<8x8x128xf32>
      %19 = arith.mulf %9, %18 : vector<8x8x128xf32>
      %cst_13 = arith.constant dense<0.000000e+00> : vector<8x128xf32>
      %20 = vector.multi_reduction <add>, %19, %cst_13 [1] : vector<8x8x128xf32> to vector<8x128xf32>
      %21 = vector.broadcast %16 : vector<8x1xf32> to vector<8x128xf32>
      %22 = arith.divf %20, %21 : vector<8x128xf32>
      %c0_14 = arith.constant 0 : index
      %c0_15 = arith.constant 0 : index
      %23 = vector.load %arg4[%c0_14, %c0_15] : memref<128x384xbf16, #tpu.memory_space<vmem>>, vector<128x128xbf16>
      %c0_16 = arith.constant 0 : index
      %c128 = arith.constant 128 : index
      %24 = vector.load %arg4[%c0_16, %c128] : memref<128x384xbf16, #tpu.memory_space<vmem>>, vector<128x128xbf16>
      %c0_17 = arith.constant 0 : index
      %c256 = arith.constant 256 : index
      %25 = vector.load %arg4[%c0_17, %c256] : memref<128x384xbf16, #tpu.memory_space<vmem>>, vector<128x128xbf16>
      %c0_18 = arith.constant 0 : index
      %c0_19 = arith.constant 0 : index
      %26 = vector.load %arg5[%c0_18, %c0_19] : memref<2x128xf32, #tpu.memory_space<vmem>>, vector<1x128xf32>
      %c1 = arith.constant 1 : index
      %c0_20 = arith.constant 0 : index
      %27 = vector.load %arg5[%c1, %c0_20] : memref<2x128xf32, #tpu.memory_space<vmem>>, vector<1x128xf32>
      %28 = vector.shape_cast %9 : vector<8x8x128xf32> to vector<64x128xf32>
      %29 = arith.truncf %28 : vector<64x128xf32> to vector<64x128xbf16>
      %cst_21 = arith.constant dense<0.000000e+00> : vector<64x128xf32>
      %30 = tpu.matmul %29, %23, %cst_21 {dimension_numbers = #tpu.dot_dimension_numbers<[1], [0], [0], [1], [0, 0, 1, 1], [], []>} : vector<64x128xbf16>, vector<128x128xbf16>, vector<64x128xf32> -> vector<64x128xf32>
      %31 = vector.shape_cast %30 : vector<64x128xf32> to vector<8x8x128xf32>
      %32 = arith.truncf %12 : vector<8x128xf32> to vector<8x128xbf16>
      %cst_22 = arith.constant dense<0.000000e+00> : vector<8x128xf32>
      %33 = tpu.matmul %32, %24, %cst_22 {dimension_numbers = #tpu.dot_dimension_numbers<[1], [0], [0], [1], [0, 0, 1, 1], [], []>} : vector<8x128xbf16>, vector<128x128xbf16>, vector<8x128xf32> -> vector<8x128xf32>
      %34 = arith.truncf %22 : vector<8x128xf32> to vector<8x128xbf16>
      %cst_23 = arith.constant dense<0.000000e+00> : vector<8x128xf32>
      %35 = tpu.matmul %34, %25, %cst_23 {dimension_numbers = #tpu.dot_dimension_numbers<[1], [0], [0], [1], [0, 0, 1, 1], [], []>} : vector<8x128xbf16>, vector<128x128xbf16>, vector<8x128xf32> -> vector<8x128xf32>
      %36 = arith.addf %33, %35 : vector<8x128xf32>
      %37 = vector.broadcast %27 : vector<1x128xf32> to vector<8x128xf32>
      %38 = arith.addf %36, %37 : vector<8x128xf32>
      %39 = vector.shape_cast %38 : vector<8x128xf32> to vector<8x1x128xf32>
      %40 = vector.broadcast %39 : vector<8x1x128xf32> to vector<8x8x128xf32>
      %41 = arith.addf %31, %40 : vector<8x8x128xf32>
      %42 = arith.negf %41 : vector<8x8x128xf32>
      %43 = math.exp %42 : vector<8x8x128xf32>
      %cst_24 = arith.constant 1.000000e+00 : f32
      %44 = vector.broadcast %cst_24 : f32 to vector<8x8x128xf32>
      %45 = arith.addf %44, %43 : vector<8x8x128xf32>
      %46 = arith.divf %44, %45 : vector<8x8x128xf32>
      %47 = vector.shape_cast %26 : vector<1x128xf32> to vector<1x1x128xf32>
      %48 = vector.broadcast %47 : vector<1x1x128xf32> to vector<8x8x128xf32>
      %49 = arith.mulf %46, %48 : vector<8x8x128xf32>
      %cst_25 = arith.constant dense<0.000000e+00> : vector<8x8xf32>
      %50 = vector.multi_reduction <add>, %49, %cst_25 [2] : vector<8x8x128xf32> to vector<8x8xf32>
      %51 = vector.shape_cast %50 : vector<8x8xf32> to vector<8x8x1xf32>
      %52 = vector.broadcast %51 : vector<8x8x1xf32> to vector<8x8x128xf32>
      %53 = arith.mulf %52, %9 : vector<8x8x128xf32>
      %cst_26 = arith.constant dense<0.000000e+00> : vector<8x128xf32>
      %54 = vector.multi_reduction <add>, %53, %cst_26 [1] : vector<8x8x128xf32> to vector<8x128xf32>
      %55 = arith.addf %54, %22 : vector<8x128xf32>
      %c0_27 = arith.constant 0 : index
      %c0_28 = arith.constant 0 : index
      %56 = vector.load %arg6[%c0_27, %c0_28] : memref<128x256xbf16, #tpu.memory_space<vmem>>, vector<128x128xbf16>
      %c0_29 = arith.constant 0 : index
      %c128_30 = arith.constant 128 : index
      %57 = vector.load %arg6[%c0_29, %c128_30] : memref<128x256xbf16, #tpu.memory_space<vmem>>, vector<128x128xbf16>
      %58 = arith.truncf %55 : vector<8x128xf32> to vector<8x128xbf16>
      %cst_31 = arith.constant dense<0.000000e+00> : vector<8x128xf32>
      %59 = tpu.matmul %58, %56, %cst_31 {dimension_numbers = #tpu.dot_dimension_numbers<[1], [0], [0], [1], [0, 0, 1, 1], [], []>} : vector<8x128xbf16>, vector<128x128xbf16>, vector<8x128xf32> -> vector<8x128xf32>
      %c0_32 = arith.constant 0 : index
      %c0_33 = arith.constant 0 : index
      %60 = vector.load %arg7[%c0_32, %c0_33] : memref<2x128xf32, #tpu.memory_space<vmem>>, vector<1x128xf32>
      %61 = vector.broadcast %60 : vector<1x128xf32> to vector<8x128xf32>
      %62 = arith.addf %59, %61 : vector<8x128xf32>
      %63 = math.tanh %62 : vector<8x128xf32>
      %64 = arith.truncf %12 : vector<8x128xf32> to vector<8x128xbf16>
      %cst_34 = arith.constant dense<0.000000e+00> : vector<8x128xf32>
      %65 = tpu.matmul %64, %57, %cst_34 {dimension_numbers = #tpu.dot_dimension_numbers<[1], [0], [0], [1], [0, 0, 1, 1], [], []>} : vector<8x128xbf16>, vector<128x128xbf16>, vector<8x128xf32> -> vector<8x128xf32>
      %c1_35 = arith.constant 1 : index
      %c0_36 = arith.constant 0 : index
      %66 = vector.load %arg7[%c1_35, %c0_36] : memref<2x128xf32, #tpu.memory_space<vmem>>, vector<1x128xf32>
      %67 = vector.broadcast %66 : vector<1x128xf32> to vector<8x128xf32>
      %68 = arith.addf %65, %67 : vector<8x128xf32>
      %69 = math.tanh %68 : vector<8x128xf32>
      %70 = arith.mulf %63, %69 : vector<8x128xf32>
      %c0_37 = arith.constant 0 : index
      %c0_38 = arith.constant 0 : index
      %71 = vector.load %arg11[%c0_37, %c0_38] : memref<8x128xf32, #tpu.memory_space<vmem>>, vector<8x128xf32>
      tpu.vector_store %arg11[%c0_37, %c0_38], %70 {strides = array<i32>} : memref<8x128xf32, #tpu.memory_space<vmem>>, vector<8x128xf32>,
      %c0_39 = arith.constant 0 : index
      %c0_40 = arith.constant 0 : index
      %72 = vector.load %arg10[%c0_39, %c0_40] : memref<8x128xf32, #tpu.memory_space<vmem>>, vector<8x128xf32>
      tpu.vector_store %arg10[%c0_39, %c0_40], %22 {strides = array<i32>} : memref<8x128xf32, #tpu.memory_space<vmem>>, vector<8x128xf32>,
    } else {
    }
    %c0 = arith.constant 0 : index
    %c0_1 = arith.constant 0 : index
    %3 = vector.load %arg11[%c0, %c0_1] : memref<8x128xf32, #tpu.memory_space<vmem>>, vector<8x128xf32>
    %4 = arith.truncf %3 : vector<8x128xf32> to vector<8x128xbf16>
    %c0_2 = arith.constant 0 : index
    %c0_3 = arith.constant 0 : index
    %5 = vector.load %arg8[%c0_2, %c0_3] : memref<128x128xbf16, #tpu.memory_space<vmem>>, vector<128x128xbf16>
    %cst = arith.constant dense<0.000000e+00> : vector<8x128xf32>
    %6 = tpu.matmul %4, %5, %cst {dimension_numbers = #tpu.dot_dimension_numbers<[1], [0], [0], [1], [0, 0, 1, 1], [], []>} : vector<8x128xbf16>, vector<128x128xbf16>, vector<8x128xf32> -> vector<8x128xf32>
    %c0_4 = arith.constant 0 : index
    %c0_5 = arith.constant 0 : index
    %7 = vector.load %arg9[%c0_4, %c0_5] : memref<8x128xf32, #tpu.memory_space<vmem>>, vector<8x128xf32>
    tpu.vector_store %arg9[%c0_4, %c0_5], %6 {strides = array<i32>} : memref<8x128xf32, #tpu.memory_space<vmem>>, vector<8x128xf32>,
    return
  }
  func.func @transform_0(%arg0: i32, %arg1: i32) -> (i32, i32, i32) {
    %c0_i32 = arith.constant 0 : i32
    %c0_i32_0 = arith.constant 0 : i32
    %c0_i32_1 = arith.constant 0 : i32
    return %arg0, %c0_i32, %c0_i32_0 : i32, i32, i32
  }
  func.func @transform_1(%arg0: i32, %arg1: i32) -> (i32, i32) {
    %c0_i32 = arith.constant 0 : i32
    %c0_i32_0 = arith.constant 0 : i32
    return %arg0, %c0_i32 : i32, i32
  }
  func.func @transform_2(%arg0: i32, %arg1: i32) -> (i32, i32) {
    %c0_i32 = arith.constant 0 : i32
    %c0_i32_0 = arith.constant 0 : i32
    %c0_i32_1 = arith.constant 0 : i32
    return %c0_i32, %c0_i32_0 : i32, i32
  }
  func.func @transform_3(%arg0: i32, %arg1: i32) -> (i32, i32) {
    %c0_i32 = arith.constant 0 : i32
    %c0_i32_0 = arith.constant 0 : i32
    %c0_i32_1 = arith.constant 0 : i32
    return %c0_i32, %c0_i32_0 : i32, i32
  }
  func.func @transform_4(%arg0: i32, %arg1: i32) -> (i32, i32) {
    %c0_i32 = arith.constant 0 : i32
    %c0_i32_0 = arith.constant 0 : i32
    %c0_i32_1 = arith.constant 0 : i32
    return %c0_i32, %c0_i32_0 : i32, i32
  }
  func.func @transform_5(%arg0: i32, %arg1: i32) -> (i32, i32) {
    %c0_i32 = arith.constant 0 : i32
    %c0_i32_0 = arith.constant 0 : i32
    %c0_i32_1 = arith.constant 0 : i32
    return %c0_i32, %c0_i32_0 : i32, i32
  }
  func.func @transform_6(%arg0: i32, %arg1: i32) -> (i32, i32) {
    %c0_i32 = arith.constant 0 : i32
    %c0_i32_0 = arith.constant 0 : i32
    return %c0_i32, %arg1 : i32, i32
  }
  func.func @transform_7(%arg0: i32, %arg1: i32) -> (i32, i32) {
    %c0_i32 = arith.constant 0 : i32
    return %arg0, %arg1 : i32, i32
  }
  func.func @transform_8(%arg0: i32, %arg1: i32) -> (i32, i32) {
    %c0_i32 = arith.constant 0 : i32
    %c0_i32_0 = arith.constant 0 : i32
    return %arg0, %c0_i32 : i32, i32
  }
}

</mosaic_0001>

<llo_original>
// kernel: tpu_custom_call.1
$region0: #{tpu_custom_call.1}
  #allocation0 [shape = 'u32[]', space=smem, size = 0x4, offset = 0x4, fixed_abs, tag = 'smem constant byte address 0x4 - core index']
  #allocation1 [shape = 'u32[144,128]{1,0:T(1,128)}', space=vmem, size = 0x12000, scoped, tag = 'internal scratch']
  #allocation2 [shape = 'f32[8,128]{1,0:T(8,128)}', space=vmem, size = 0x1000, scoped, tag = 'scratch operand']
  %s0 = inlined_call_operand.hbm [shape: bf16[8,8,128], index: 0, kind: input, shape index: {}]
  %s1 = inlined_call_operand.hbm [shape: f32[8,8], index: 1, kind: input, shape index: {}]
  %s2 = inlined_call_operand.hbm [shape: bf16[128,384], index: 2, kind: input, shape index: {}]
  %s3 = inlined_call_operand.vmem [shape: f32[2,128], index: 3, kind: input, shape index: {}]
  %s4 = inlined_call_operand.hbm [shape: bf16[128,256], index: 4, kind: input, shape index: {}]
  %s5 = inlined_call_operand.vmem [shape: f32[2,128], index: 5, kind: input, shape index: {}]
  %s6 = inlined_call_operand.hbm [shape: bf16[128,128], index: 6, kind: input, shape index: {}]
  %s7 = inlined_call_operand.hbm [shape: f32[8,128], index: 7, kind: output, shape index: {0}]
  %s8 = inlined_call_operand.hbm [shape: f32[8,128], index: 8, kind: output, shape index: {1}]
  %9 = xla_tuple %s7, %s8
  %s10 = sld [smem:[#allocation0]]
  $region70: #{tpu_custom_call.1} parent=0
    _
  %s12 = ssub.s32 1, %s10
  %s13 = scalar_select 0, %s12, %s10
  $region1: #{tpu_custom_call.1} parent=0
    #allocation3 [shape = 'u8[16384]{0}', space=vmem, size = 0x4000, scoped, tag = 'input window, operand 0, single buffered']
    #allocation4 [shape = 's32[1]{0}', space=sflag, size = 0x4, scoped, tag = 'scoped memory for tpu_custom_call.1']
    #allocation5 [shape = 's32[1]{0}', space=sflag, size = 0x4, scoped, tag = 'scoped memory for tpu_custom_call.1']
    #allocation6 [shape = 'u8[4096]{0}', space=vmem, size = 0x1000, scoped, tag = 'input window, operand 1, single buffered']
    #allocation7 [shape = 's32[1]{0}', space=sflag, size = 0x4, scoped, tag = 'scoped memory for tpu_custom_call.1']
    #allocation8 [shape = 'u8[98304]{0}', space=vmem, size = 0x18000, scoped, tag = 'input window, operand 2, single buffered']
    #allocation9 [shape = 'u8[65536]{0}', space=vmem, size = 0x10000, scoped, tag = 'input window, operand 4, single buffered']
    #allocation10 [shape = 's32[1]{0}', space=sflag, size = 0x4, scoped, tag = 'scoped memory for tpu_custom_call.1']
    #allocation11 [shape = 'u8[32768]{0}', space=vmem, size = 0x8000, scoped, tag = 'input window, operand 6, single buffered']
    #allocation12 [shape = 'u8[4096]{0}', space=vmem, size = 0x1000, scoped, tag = 'output window, operand 0, single buffered']
    #allocation13 [shape = 'u8[4096]{0}', space=vmem, size = 0x1000, scoped, tag = 'output window, operand 1, single buffered']
    #allocation14 [shape = 's32[1]{0}', space=sflag, size = 0x4, scoped, tag = 'scoped memory for tpu_custom_call.1']
    %14 = vsyncpa [#allocation4], 0
    %15 = vsyncpa [#allocation7], 0
    %16 = vsyncpa [#allocation10], 0
    %17 = vsyncpa [#allocation5], 0
    %18 = vsyncpa [#allocation14], 0
    // Predicated region
    $region2: #{tpu_custom_call.1} parent=1 // pred_check
      _
    $region3: #{tpu_custom_call.1} parent=1 // pred_check_branch
      %20 = sbr.rel (0) target = $region5
    $region4: #{tpu_custom_call.1} parent=1 // pred_region
      %s22 = ssub.s32 512, 512
      %23 = vsyncadd [#allocation4], %s22
      %s24 = sshll.u32 [#allocation3], 4
      %s25 = int_to_ptr.vmem [resolvable:$true] %s24
      %30 = dma.hbm_to_vmem [thread:$0]  %s0, 512, %s25, [#allocation4], 64, 64, 4
    $region5: #{tpu_custom_call.1} parent=1 // pred_fallthru
      _
    // Predicated region
    $region6: #{tpu_custom_call.1} parent=1 // pred_check
      _
    $region7: #{tpu_custom_call.1} parent=1 // pred_check_branch
      %32 = sbr.rel (0) target = $region9
    $region8: #{tpu_custom_call.1} parent=1 // pred_region
      %s34 = ssub.s32 128, 128
      %35 = vsyncadd [#allocation7], %s34
      %s37 = sshll.u32 [#allocation6], 4
      %s38 = int_to_ptr.vmem [resolvable:$true] %s37
      %40 = dma.hbm_to_vmem [thread:$0]  %s1, 128, %s38, [#allocation7]
    $region9: #{tpu_custom_call.1} parent=1 // pred_fallthru
      _
    // Predicated region
    $region10: #{tpu_custom_call.1} parent=1 // pred_check
      _
    $region11: #{tpu_custom_call.1} parent=1 // pred_check_branch
      %42 = sbr.rel (0) target = $region13
    $region12: #{tpu_custom_call.1} parent=1 // pred_region
      %s44 = ssub.s32 3072, 3072
      %45 = vsyncadd [#allocation7], %s44
      %s46 = sshll.u32 [#allocation8], 4
      %s47 = int_to_ptr.vmem [resolvable:$true] %s46
      %52 = dma.hbm_to_vmem [thread:$0]  %s2, 3072, %s47, [#allocation7], 192, 192, 12
    $region13: #{tpu_custom_call.1} parent=1 // pred_fallthru
      _
    // Predicated region
    $region14: #{tpu_custom_call.1} parent=1 // pred_check
      _
    $region15: #{tpu_custom_call.1} parent=1 // pred_check_branch
      %54 = sbr.rel (0) target = $region17
    $region16: #{tpu_custom_call.1} parent=1 // pred_region
      _
    $region17: #{tpu_custom_call.1} parent=1 // pred_fallthru
      _
    // Predicated region
    $region18: #{tpu_custom_call.1} parent=1 // pred_check
      _
    $region19: #{tpu_custom_call.1} parent=1 // pred_check_branch
      %56 = sbr.rel (0) target = $region21
    $region20: #{tpu_custom_call.1} parent=1 // pred_region
      %s58 = ssub.s32 2048, 2048
      %59 = vsyncadd [#allocation10], %s58
      %s60 = sshll.u32 [#allocation9], 4
      %s61 = int_to_ptr.vmem [resolvable:$true] %s60
      %66 = dma.hbm_to_vmem [thread:$0]  %s4, 2048, %s61, [#allocation10], 128, 128, 8
    $region21: #{tpu_custom_call.1} parent=1 // pred_fallthru
      _
    // Predicated region
    $region22: #{tpu_custom_call.1} parent=1 // pred_check
      _
    $region23: #{tpu_custom_call.1} parent=1 // pred_check_branch
      %68 = sbr.rel (0) target = $region25
    $region24: #{tpu_custom_call.1} parent=1 // pred_region
      _
    $region25: #{tpu_custom_call.1} parent=1 // pred_fallthru
      _
    // Predicated region
    $region26: #{tpu_custom_call.1} parent=1 // pred_check
      _
    $region27: #{tpu_custom_call.1} parent=1 // pred_check_branch
      %70 = sbr.rel (0) target = $region29
    $region28: #{tpu_custom_call.1} parent=1 // pred_region
      %s72 = ssub.s32 1024, 1024
      %73 = vsyncadd [#allocation10], %s72
      %s74 = sshll.u32 [#allocation11], 4
      %s75 = int_to_ptr.vmem [resolvable:$true] %s74
      %80 = dma.hbm_to_vmem [thread:$0]  %s6, 1024, %s75, [#allocation10], 64, 64, 4
    $region29: #{tpu_custom_call.1} parent=1 // pred_fallthru
      _
    // Predicated region
    $region30: #{tpu_custom_call.1} parent=1 // pred_check
      _
    $region31: #{tpu_custom_call.1} parent=1 // pred_check_branch
      %82 = sbr.rel (0) target = $region33
    $region32: #{tpu_custom_call.1} parent=1 // pred_region
      %83 = dma.done [#allocation4], 512
    $region33: #{tpu_custom_call.1} parent=1 // pred_fallthru
      _
    // Predicated region
    $region34: #{tpu_custom_call.1} parent=1 // pred_check
      _
    $region35: #{tpu_custom_call.1} parent=1 // pred_check_branch
      %85 = sbr.rel (0) target = $region37
    $region36: #{tpu_custom_call.1} parent=1 // pred_region
      %86 = dma.done [#allocation7], 128
    $region37: #{tpu_custom_call.1} parent=1 // pred_fallthru
      _
    // Predicated region
    $region38: #{tpu_custom_call.1} parent=1 // pred_check
      _
    $region39: #{tpu_custom_call.1} parent=1 // pred_check_branch
      %88 = sbr.rel (0) target = $region41
    $region40: #{tpu_custom_call.1} parent=1 // pred_region
      %89 = dma.done [#allocation7], 3072
    $region41: #{tpu_custom_call.1} parent=1 // pred_fallthru
      _
    // Predicated region
    $region42: #{tpu_custom_call.1} parent=1 // pred_check
      _
    $region43: #{tpu_custom_call.1} parent=1 // pred_check_branch
      %91 = sbr.rel (0) target = $region45
    $region44: #{tpu_custom_call.1} parent=1 // pred_region
      %92 = dma.done [#allocation10], 2048
    $region45: #{tpu_custom_call.1} parent=1 // pred_fallthru
      _
    // Predicated region
    $region46: #{tpu_custom_call.1} parent=1 // pred_check
      _
    $region47: #{tpu_custom_call.1} parent=1 // pred_check_branch
      %94 = sbr.rel (0) target = $region49
    $region48: #{tpu_custom_call.1} parent=1 // pred_region
      %95 = dma.done [#allocation10], 1024
    $region49: #{tpu_custom_call.1} parent=1 // pred_fallthru
      _
    %p97 = scmp.eq.s32.totalorder 0, 0
    // Predicated region
    $region50: #{tpu_custom_call.1} parent=1 // pred_check
      %p98 = pneg %p97
    $region51: #{tpu_custom_call.1} parent=1 // pred_check_branch
      %100 = sbr.rel (%p98) target = $region53
    $region52: #{tpu_custom_call.1} parent=1 // pred_region
      %v101 = vld [vmem:[#allocation3] sm:$0xf]
      %v102 = vld [vmem:[#allocation3 + $0x4] sm:$0xf]
      %v103 = vld [vmem:[#allocation3 + $0x8] sm:$0xf]
      %v104 = vld [vmem:[#allocation3 + $0xc] sm:$0xf]
      %v105 = vld [vmem:[#allocation3 + $0x10] sm:$0xf]
      %v106 = vld [vmem:[#allocation3 + $0x14] sm:$0xf]
      %v107 = vld [vmem:[#allocation3 + $0x18] sm:$0xf]
      %v108 = vld [vmem:[#allocation3 + $0x1c] sm:$0xf]
      %v109 = vunpack.c.l.bf16 %v101
      %v110 = vunpack.c.l.bf16 %v102
      %v111 = vunpack.c.l.bf16 %v103
      %v112 = vunpack.c.l.bf16 %v104
      %v113 = vunpack.c.l.bf16 %v105
      %v114 = vunpack.c.l.bf16 %v106
      %v115 = vunpack.c.l.bf16 %v107
      %v116 = vunpack.c.l.bf16 %v108
      %v117 = vld [vmem:[#allocation6] sm:$0xff]
      %vm118 = vcmask 64512
      %v119 = vsel %vm118, %v117, 0.0
      %120 = vadd.xlane.f32.xlu0 %v119
      %v121 = vpop.xlane.xlu0 %120
      %v122 = vmax.f32 %v121, 1.0
      %v123 = vlaneseq
      %v124 = vshrl.u32 %v123, 7
      %v125 = vsub.s32 0, %v124
      %v126 = vrot.slane %v117, %v125
      %128 = vbcast.lane.b32.xlu0 %v126, 256
      %v129 = vpop.permute.xlu0 %128
      %v130 = vlaneseq
      %v131 = vshrl.u32 %v130, 7
      %v132 = vsub.s32 1, %v131
      %v133 = vrot.slane %v117, %v132
      %135 = vbcast.lane.b32.xlu0 %v133, 256
      %v136 = vpop.permute.xlu0 %135
      %v137 = vlaneseq
      %v138 = vshrl.u32 %v137, 7
      %v139 = vsub.s32 2, %v138
      %v140 = vrot.slane %v117, %v139
      %142 = vbcast.lane.b32.xlu0 %v140, 256
      %v143 = vpop.permute.xlu0 %142
      %v144 = vlaneseq
      %v145 = vshrl.u32 %v144, 7
      %v146 = vsub.s32 3, %v145
      %v147 = vrot.slane %v117, %v146
      %149 = vbcast.lane.b32.xlu0 %v147, 256
      %v150 = vpop.permute.xlu0 %149
      %v151 = vlaneseq
      %v152 = vshrl.u32 %v151, 7
      %v153 = vsub.s32 4, %v152
      %v154 = vrot.slane %v117, %v153
      %156 = vbcast.lane.b32.xlu0 %v154, 256
      %v157 = vpop.permute.xlu0 %156
      %v158 = vlaneseq
      %v159 = vshrl.u32 %v158, 7
      %v160 = vsub.s32 5, %v159
      %v161 = vrot.slane %v117, %v160
      %163 = vbcast.lane.b32.xlu0 %v161, 256
      %v164 = vpop.permute.xlu0 %163
      %v165 = vlaneseq
      %v166 = vshrl.u32 %v165, 7
      %v167 = vsub.s32 6, %v166
      %v168 = vrot.slane %v117, %v167
      %170 = vbcast.lane.b32.xlu0 %v168, 256
      %v171 = vpop.permute.xlu0 %170
      %v172 = vlaneseq
      %v173 = vshrl.u32 %v172, 7
      %v174 = vsub.s32 7, %v173
      %v175 = vrot.slane %v117, %v174
      %177 = vbcast.lane.b32.xlu0 %v175, 256
      %v178 = vpop.permute.xlu0 %177
      %v179 = vmul.f32 %v109, %v129
      %v180 = vmul.f32 %v110, %v136
      %v181 = vmul.f32 %v111, %v143
      %v182 = vmul.f32 %v112, %v150
      %v183 = vmul.f32 %v113, %v157
      %v184 = vmul.f32 %v114, %v164
      %v185 = vmul.f32 %v115, %v171
      %v186 = vmul.f32 %v116, %v178
      %v187 = vrot.slane %v179, 4
      %v188 = vadd.f32 %v179, %v187
      %v189 = vrot.slane %v188, 2
      %v190 = vadd.f32 %v188, %v189
      %v191 = vrot.slane %v190, 1
      %v192 = vadd.f32 %v190, %v191
      %v193 = vrot.slane %v180, 4
      %v194 = vadd.f32 %v180, %v193
      %v195 = vrot.slane %v194, 2
      %v196 = vadd.f32 %v194, %v195
      %v197 = vrot.slane %v196, 1
      %v198 = vadd.f32 %v196, %v197
      %v199 = vrot.slane %v181, 4
      %v200 = vadd.f32 %v181, %v199
      %v201 = vrot.slane %v200, 2
      %v202 = vadd.f32 %v200, %v201
      %v203 = vrot.slane %v202, 1
      %v204 = vadd.f32 %v202, %v203
      %v205 = vrot.slane %v182, 4
      %v206 = vadd.f32 %v182, %v205
      %v207 = vrot.slane %v206, 2
      %v208 = vadd.f32 %v206, %v207
      %v209 = vrot.slane %v208, 1
      %v210 = vadd.f32 %v208, %v209
      %v211 = vrot.slane %v183, 4
      %v212 = vadd.f32 %v183, %v211
      %v213 = vrot.slane %v212, 2
      %v214 = vadd.f32 %v212, %v213
      %v215 = vrot.slane %v214, 1
      %v216 = vadd.f32 %v214, %v215
      %v217 = vrot.slane %v184, 4
      %v218 = vadd.f32 %v184, %v217
      %v219 = vrot.slane %v218, 2
      %v220 = vadd.f32 %v218, %v219
      %v221 = vrot.slane %v220, 1
      %v222 = vadd.f32 %v220, %v221
      %v223 = vrot.slane %v185, 4
      %v224 = vadd.f32 %v185, %v223
      %v225 = vrot.slane %v224, 2
      %v226 = vadd.f32 %v224, %v225
      %v227 = vrot.slane %v226, 1
      %v228 = vadd.f32 %v226, %v227
      %v229 = vrot.slane %v186, 4
      %v230 = vadd.f32 %v186, %v229
      %v231 = vrot.slane %v230, 2
      %v232 = vadd.f32 %v230, %v231
      %v233 = vrot.slane %v232, 1
      %v234 = vadd.f32 %v232, %v233
      %v236 = vrot.slane %v122, 1
      %v237 = vrot.slane %v122, 2
      %v238 = vrot.slane %v122, 3
      %v239 = vrot.slane %v122, 4
      %v240 = vrot.slane %v122, 5
      %v241 = vrot.slane %v122, 6
      %v242 = vrot.slane %v122, 7
      %v251 = vrcp.pop %v122
      %v252 = vmul.f32 %v192, %v251
      %v253 = vrcp.pop %v236
      %v254 = vmul.f32 %v198, %v253
      %v255 = vrcp.pop %v237
      %v256 = vmul.f32 %v204, %v255
      %v257 = vrcp.pop %v238
      %v258 = vmul.f32 %v210, %v257
      %v259 = vrcp.pop %v239
      %v260 = vmul.f32 %v216, %v259
      %v261 = vrcp.pop %v240
      %v262 = vmul.f32 %v222, %v261
      %v263 = vrcp.pop %v241
      %v264 = vmul.f32 %v228, %v263
      %v265 = vrcp.pop %v242
      %v266 = vmul.f32 %v234, %v265
      %v267 = vld [vmem:[#allocation8] sm:$0xf]
      %v268 = vld [vmem:[#allocation8 + $0xc] sm:$0xf]
      %v269 = vld [vmem:[#allocation8 + $0x18] sm:$0xf]
      %v270 = vld [vmem:[#allocation8 + $0x24] sm:$0xf]
      %v271 = vld [vmem:[#allocation8 + $0x30] sm:$0xf]
      %v272 = vld [vmem:[#allocation8 + $0x3c] sm:$0xf]
      %v273 = vld [vmem:[#allocation8 + $0x48] sm:$0xf]
      %v274 = vld [vmem:[#allocation8 + $0x54] sm:$0xf]
      %v275 = vld [vmem:[#allocation8 + $0x60] sm:$0xf]
      %v276 = vld [vmem:[#allocation8 + $0x6c] sm:$0xf]
      %v277 = vld [vmem:[#allocation8 + $0x78] sm:$0xf]
      %v278 = vld [vmem:[#allocation8 + $0x84] sm:$0xf]
      %v279 = vld [vmem:[#allocation8 + $0x90] sm:$0xf]
      %v280 = vld [vmem:[#allocation8 + $0x9c] sm:$0xf]
      %v281 = vld [vmem:[#allocation8 + $0xa8] sm:$0xf]
      %v282 = vld [vmem:[#allocation8 + $0xb4] sm:$0xf]
      %v283 = vld [vmem:[#allocation8 + $0x4] sm:$0xf]
      %v284 = vld [vmem:[#allocation8 + $0x10] sm:$0xf]
      %v285 = vld [vmem:[#allocation8 + $0x1c] sm:$0xf]
      %v286 = vld [vmem:[#allocation8 + $0x28] sm:$0xf]
      %v287 = vld [vmem:[#allocation8 + $0x34] sm:$0xf]
      %v288 = vld [vmem:[#allocation8 + $0x40] sm:$0xf]
      %v289 = vld [vmem:[#allocation8 + $0x4c] sm:$0xf]
      %v290 = vld [vmem:[#allocation8 + $0x58] sm:$0xf]
      %v291 = vld [vmem:[#allocation8 + $0x64] sm:$0xf]
      %v292 = vld [vmem:[#allocation8 + $0x70] sm:$0xf]
      %v293 = vld [vmem:[#allocation8 + $0x7c] sm:$0xf]
      %v294 = vld [vmem:[#allocation8 + $0x88] sm:$0xf]
      %v295 = vld [vmem:[#allocation8 + $0x94] sm:$0xf]
      %v296 = vld [vmem:[#allocation8 + $0xa0] sm:$0xf]
      %v297 = vld [vmem:[#allocation8 + $0xac] sm:$0xf]
      %v298 = vld [vmem:[#allocation8 + $0xb8] sm:$0xf]
      %v299 = vld [vmem:[#allocation8 + $0x8] sm:$0xf]
      %v300 = vld [vmem:[#allocation8 + $0x14] sm:$0xf]
      %v301 = vld [vmem:[#allocation8 + $0x20] sm:$0xf]
      %v302 = vld [vmem:[#allocation8 + $0x2c] sm:$0xf]
      %v303 = vld [vmem:[#allocation8 + $0x38] sm:$0xf]
      %v304 = vld [vmem:[#allocation8 + $0x44] sm:$0xf]
      %v305 = vld [vmem:[#allocation8 + $0x50] sm:$0xf]
      %v306 = vld [vmem:[#allocation8 + $0x5c] sm:$0xf]
      %v307 = vld [vmem:[#allocation8 + $0x68] sm:$0xf]
      %v308 = vld [vmem:[#allocation8 + $0x74] sm:$0xf]
      %v309 = vld [vmem:[#allocation8 + $0x80] sm:$0xf]
      %v310 = vld [vmem:[#allocation8 + $0x8c] sm:$0xf]
      %v311 = vld [vmem:[#allocation8 + $0x98] sm:$0xf]
      %v312 = vld [vmem:[#allocation8 + $0xa4] sm:$0xf]
      %v313 = vld [vmem:[#allocation8 + $0xb0] sm:$0xf]
      %v314 = vld [vmem:[#allocation8 + $0xbc] sm:$0xf]
      %v315 = vld [vmem:[%s3] sm:$0x1]
      %v316 = vld [vmem:[%s3 + $0x1] sm:$0x1]
      %v317 = vpack.c.bf16 %v110, %v109
      %v318 = vpack.c.bf16 %v112, %v111
      %v319 = vpack.c.bf16 %v114, %v113
      %v320 = vpack.c.bf16 %v116, %v115
      %v337 = vunpack.c.l.b16 %v267
      %v338 = vunpack.c.l.b16 %v268
      %v339 = vunpack.c.l.b16 %v269
      %v340 = vunpack.c.l.b16 %v270
      %v341 = vunpack.c.l.b16 %v271
      %v342 = vunpack.c.l.b16 %v272
      %v343 = vunpack.c.l.b16 %v273
      %v344 = vunpack.c.l.b16 %v274
      %v345 = vunpack.c.l.b16 %v275
      %v346 = vunpack.c.l.b16 %v276
      %v347 = vunpack.c.l.b16 %v277
      %v348 = vunpack.c.l.b16 %v278
      %v349 = vunpack.c.l.b16 %v279
      %v350 = vunpack.c.l.b16 %v280
      %v351 = vunpack.c.l.b16 %v281
      %v352 = vunpack.c.l.b16 %v282
      %v353 = vpack.c.b16 %v338, %v337
      %v354 = vpack.c.b16 %v340, %v339
      %v355 = vpack.c.b16 %v342, %v341
      %v356 = vpack.c.b16 %v344, %v343
      %v357 = vpack.c.b16 %v346, %v345
      %v358 = vpack.c.b16 %v348, %v347
      %v359 = vpack.c.b16 %v350, %v349
      %v360 = vpack.c.b16 %v352, %v351
      %369 = vmatprep.subr.bf16.mxu0 0
      %370 = vmatpush1.bf16.msra.mxu0 %v360
      %371 = vmatprep.subr.bf16.mxu0 0
      %372 = vmatpush1.bf16.msra.mxu0 %v359
      %373 = vmatprep.subr.bf16.mxu0 0
      %374 = vmatpush1.bf16.msra.mxu0 %v358
      %375 = vmatprep.subr.bf16.mxu0 0
      %376 = vmatpush1.bf16.msra.mxu0 %v357
      %377 = vmatprep.subr.bf16.mxu0 0
      %378 = vmatpush1.bf16.msra.mxu0 %v356
      %379 = vmatprep.subr.bf16.mxu0 0
      %380 = vmatpush1.bf16.msra.mxu0 %v355
      %381 = vmatprep.subr.bf16.mxu0 0
      %382 = vmatpush1.bf16.msra.mxu0 %v354
      %383 = vmatprep.subr.bf16.mxu0 0
      %384 = vmatpush1.bf16.msra.mxu0 %v353
      %385 = vmatprep.subr.bf16.mxu0 0
      %386 = vmatpush2.bf16.msra.mxu0 0
      %387 = vmatprep.subr.bf16.mxu0 0
      %388 = vmatpush2.bf16.msra.mxu0 0
      %389 = vmatprep.subr.bf16.mxu0 0
      %390 = vmatpush2.bf16.msra.mxu0 0
      %391 = vmatprep.subr.bf16.mxu0 0
      %392 = vmatpush2.bf16.msra.mxu0 0
      %393 = vmatprep.subr.bf16.mxu0 0
      %394 = vmatpush2.bf16.msra.mxu0 0
      %395 = vmatprep.subr.bf16.mxu0 0
      %396 = vmatpush2.bf16.msra.mxu0 0
      %397 = vmatprep.subr.bf16.mxu0 0
      %398 = vmatpush2.bf16.msra.mxu0 0
      %399 = vmatprep.subr.bf16.mxu0 0
      %400 = vmatpush2.bf16.msra.mxu0 0
      %401 = vmatprep.mubr.bf16.mxu0 0
      %402 = vmatmul.mubr.bf16.gmra.mxu0 %v317
      %v403 = vpop.f32.mrf.mxu0
      %v404 = vadd.f32 0.0, %v403
      %v405 = vpop.f32.mrf.mxu0
      %v406 = vpop.f32.mrf.mxu0
      %v407 = vadd.f32 0.0, %v406
      %v408 = vpop.f32.mrf.mxu0
      %409 = vmatprep.mubr.bf16.mxu0 0
      %410 = vmatmul.mubr.bf16.gmra.mxu0 %v318
      %v411 = vpop.f32.mrf.mxu0
      %v412 = vadd.f32 0.0, %v411
      %v413 = vpop.f32.mrf.mxu0
      %v414 = vpop.f32.mrf.mxu0
      %v415 = vadd.f32 0.0, %v414
      %v416 = vpop.f32.mrf.mxu0
      %417 = vmatprep.mubr.bf16.mxu0 0
      %418 = vmatmul.mubr.bf16.gmra.mxu0 %v319
      %v419 = vpop.f32.mrf.mxu0
      %v420 = vadd.f32 0.0, %v419
      %v421 = vpop.f32.mrf.mxu0
      %v422 = vpop.f32.mrf.mxu0
      %v423 = vadd.f32 0.0, %v422
      %v424 = vpop.f32.mrf.mxu0
      %425 = vmatprep.mubr.bf16.mxu0 0
      %426 = vmatmul.mubr.bf16.gmra.mxu0 %v320
      %v427 = vpop.f32.mrf.mxu0
      %v428 = vadd.f32 0.0, %v427
      %v429 = vpop.f32.mrf.mxu0
      %v430 = vpop.f32.mrf.mxu0
      %v431 = vadd.f32 0.0, %v430
      %v432 = vpop.f32.mrf.mxu0
      %433 = vdwg.mxu0
      %v434 = vpack.c.bf16 %v109, %v109
      %v435 = vpack.c.bf16 %v110, %v110
      %v436 = vpack.c.bf16 %v111, %v111
      %v437 = vpack.c.bf16 %v112, %v112
      %v438 = vpack.c.bf16 %v113, %v113
      %v439 = vpack.c.bf16 %v114, %v114
      %v440 = vpack.c.bf16 %v115, %v115
      %v441 = vpack.c.bf16 %v116, %v116
      %v442 = vpack.c.bf16 %v252, %v252
      %v443 = vpack.c.bf16 %v254, %v254
      %v444 = vpack.c.bf16 %v256, %v256
      %v445 = vpack.c.bf16 %v258, %v258
      %v446 = vpack.c.bf16 %v260, %v260
      %v447 = vpack.c.bf16 %v262, %v262
      %v448 = vpack.c.bf16 %v264, %v264
      %v449 = vpack.c.bf16 %v266, %v266
      %v458 = vunpack.c.l.b16 %v442
      %v459 = vunpack.c.l.b16 %v443
      %v460 = vunpack.c.l.b16 %v444
      %v461 = vunpack.c.l.b16 %v445
      %v462 = vunpack.c.l.b16 %v446
      %v463 = vunpack.c.l.b16 %v447
      %v464 = vunpack.c.l.b16 %v448
      %v465 = vunpack.c.l.b16 %v449
      %v466 = vrot.slane %v459, 7
      %vm467 = vcmask 1041409
      %v468 = vsel %vm467, %v466, %v458
      %v469 = vrot.slane %v460, 6
      %vm470 = vcmask 1042434
      %v471 = vsel %vm470, %v469, %v468
      %v472 = vrot.slane %v461, 5
      %vm473 = vcmask 1043459
      %v474 = vsel %vm473, %v472, %v471
      %v475 = vrot.slane %v462, 4
      %vm476 = vcmask 1044484
      %v477 = vsel %vm476, %v475, %v474
      %v478 = vrot.slane %v463, 3
      %vm479 = vcmask 1045509
      %v480 = vsel %vm479, %v478, %v477
      %v481 = vrot.slane %v464, 2
      %vm482 = vcmask 1046534
      %v483 = vsel %vm482, %v481, %v480
      %v484 = vrot.slane %v465, 1
      %vm485 = vcmask 1047559
      %v486 = vsel %vm485, %v484, %v483
      %v487 = vpack.c.b16 %v486, %v486
      %v505 = vunpack.c.l.b16 %v299
      %v506 = vunpack.c.l.b16 %v300
      %v507 = vunpack.c.l.b16 %v301
      %v508 = vunpack.c.l.b16 %v302
      %v509 = vunpack.c.l.b16 %v303
      %v510 = vunpack.c.l.b16 %v304
      %v511 = vunpack.c.l.b16 %v305
      %v512 = vunpack.c.l.b16 %v306
      %v513 = vunpack.c.l.b16 %v307
      %v514 = vunpack.c.l.b16 %v308
      %v515 = vunpack.c.l.b16 %v309
      %v516 = vunpack.c.l.b16 %v310
      %v517 = vunpack.c.l.b16 %v311
      %v518 = vunpack.c.l.b16 %v312
      %v519 = vunpack.c.l.b16 %v313
      %v520 = vunpack.c.l.b16 %v314
      %v521 = vpack.c.b16 %v506, %v505
      %v522 = vpack.c.b16 %v508, %v507
      %v523 = vpack.c.b16 %v510, %v509
      %v524 = vpack.c.b16 %v512, %v511
      %v525 = vpack.c.b16 %v514, %v513
      %v526 = vpack.c.b16 %v516, %v515
      %v527 = vpack.c.b16 %v518, %v517
      %v528 = vpack.c.b16 %v520, %v519
      %537 = vmatprep.subr.bf16.mxu0 0
      %538 = vmatpush1.bf16.msra.mxu0 %v528
      %539 = vmatprep.subr.bf16.mxu0 0
      %540 = vmatpush1.bf16.msra.mxu0 %v527
      %541 = vmatprep.subr.bf16.mxu0 0
      %542 = vmatpush1.bf16.msra.mxu0 %v526
      %543 = vmatprep.subr.bf16.mxu0 0
      %544 = vmatpush1.bf16.msra.mxu0 %v525
      %545 = vmatprep.subr.bf16.mxu0 0
      %546 = vmatpush1.bf16.msra.mxu0 %v524
      %547 = vmatprep.subr.bf16.mxu0 0
      %548 = vmatpush1.bf16.msra.mxu0 %v523
      %549 = vmatprep.subr.bf16.mxu0 0
      %550 = vmatpush1.bf16.msra.mxu0 %v522
      %551 = vmatprep.subr.bf16.mxu0 0
      %552 = vmatpush1.bf16.msra.mxu0 %v521
      %553 = vmatprep.subr.bf16.mxu0 0
      %554 = vmatpush2.bf16.msra.mxu0 0
      %555 = vmatprep.subr.bf16.mxu0 0
      %556 = vmatpush2.bf16.msra.mxu0 0
      %557 = vmatprep.subr.bf16.mxu0 0
      %558 = vmatpush2.bf16.msra.mxu0 0
      %559 = vmatprep.subr.bf16.mxu0 0
      %560 = vmatpush2.bf16.msra.mxu0 0
      %561 = vmatprep.subr.bf16.mxu0 0
      %562 = vmatpush2.bf16.msra.mxu0 0
      %563 = vmatprep.subr.bf16.mxu0 0
      %564 = vmatpush2.bf16.msra.mxu0 0
      %565 = vmatprep.subr.bf16.mxu0 0
      %566 = vmatpush2.bf16.msra.mxu0 0
      %567 = vmatprep.subr.bf16.mxu0 0
      %568 = vmatpush2.bf16.msra.mxu0 0
      %569 = vmatprep.mubr.bf16.mxu0 0
      %570 = vmatmul.mubr.bf16.gmra.mxu0 %v487
      %v571 = vpop.f32.mrf.mxu0
      %v572 = vadd.f32 0.0, %v571
      %v573 = vpop.f32.mrf.mxu0
      %v574 = vpop.f32.mrf.mxu0
      %v575 = vpop.f32.mrf.mxu0
      %576 = vdwg.mxu0
      %v585 = vunpack.c.l.b16 %v434
      %v586 = vunpack.c.l.b16 %v435
      %v587 = vunpack.c.l.b16 %v436
      %v588 = vunpack.c.l.b16 %v437
      %v589 = vunpack.c.l.b16 %v438
      %v590 = vunpack.c.l.b16 %v439
      %v591 = vunpack.c.l.b16 %v440
      %v592 = vunpack.c.l.b16 %v441
      %v593 = vrot.slane %v585, 7
      %v594 = vrot.slane %v586, 6
      %v595 = vsel %vm467, %v594, %v593
      %v596 = vrot.slane %v587, 5
      %v597 = vsel %vm470, %v596, %v595
      %v598 = vrot.slane %v588, 4
      %v599 = vsel %vm473, %v598, %v597
      %v600 = vrot.slane %v589, 3
      %v601 = vsel %vm476, %v600, %v599
      %v602 = vrot.slane %v590, 2
      %v603 = vsel %vm479, %v602, %v601
      %v604 = vrot.slane %v591, 1
      %v605 = vsel %vm482, %v604, %v603
      %v606 = vsel %vm485, %v592, %v605
      %v607 = vpack.c.b16 %v606, %v606
      %v625 = vunpack.c.l.b16 %v283
      %v626 = vunpack.c.l.b16 %v284
      %v627 = vunpack.c.l.b16 %v285
      %v628 = vunpack.c.l.b16 %v286
      %v629 = vunpack.c.l.b16 %v287
      %v630 = vunpack.c.l.b16 %v288
      %v631 = vunpack.c.l.b16 %v289
      %v632 = vunpack.c.l.b16 %v290
      %v633 = vunpack.c.l.b16 %v291
      %v634 = vunpack.c.l.b16 %v292
      %v635 = vunpack.c.l.b16 %v293
      %v636 = vunpack.c.l.b16 %v294
      %v637 = vunpack.c.l.b16 %v295
      %v638 = vunpack.c.l.b16 %v296
      %v639 = vunpack.c.l.b16 %v297
      %v640 = vunpack.c.l.b16 %v298
      %v641 = vpack.c.b16 %v626, %v625
      %v642 = vpack.c.b16 %v628, %v627
      %v643 = vpack.c.b16 %v630, %v629
      %v644 = vpack.c.b16 %v632, %v631
      %v645 = vpack.c.b16 %v634, %v633
      %v646 = vpack.c.b16 %v636, %v635
      %v647 = vpack.c.b16 %v638, %v637
      %v648 = vpack.c.b16 %v640, %v639
      %657 = vmatprep.subr.bf16.mxu0 0
      %658 = vmatpush1.bf16.msra.mxu0 %v648
      %659 = vmatprep.subr.bf16.mxu0 0
      %660 = vmatpush1.bf16.msra.mxu0 %v647
      %661 = vmatprep.subr.bf16.mxu0 0
      %662 = vmatpush1.bf16.msra.mxu0 %v646
      %663 = vmatprep.subr.bf16.mxu0 0
      %664 = vmatpush1.bf16.msra.mxu0 %v645
      %665 = vmatprep.subr.bf16.mxu0 0
      %666 = vmatpush1.bf16.msra.mxu0 %v644
      %667 = vmatprep.subr.bf16.mxu0 0
      %668 = vmatpush1.bf16.msra.mxu0 %v643
      %669 = vmatprep.subr.bf16.mxu0 0
      %670 = vmatpush1.bf16.msra.mxu0 %v642
      %671 = vmatprep.subr.bf16.mxu0 0
      %672 = vmatpush1.bf16.msra.mxu0 %v641
      %673 = vmatprep.subr.bf16.mxu0 0
      %674 = vmatpush2.bf16.msra.mxu0 0
      %675 = vmatprep.subr.bf16.mxu0 0
      %676 = vmatpush2.bf16.msra.mxu0 0
      %677 = vmatprep.subr.bf16.mxu0 0
      %678 = vmatpush2.bf16.msra.mxu0 0
      %679 = vmatprep.subr.bf16.mxu0 0
      %680 = vmatpush2.bf16.msra.mxu0 0
      %681 = vmatprep.subr.bf16.mxu0 0
      %682 = vmatpush2.bf16.msra.mxu0 0
      %683 = vmatprep.subr.bf16.mxu0 0
      %684 = vmatpush2.bf16.msra.mxu0 0
      %685 = vmatprep.subr.bf16.mxu0 0
      %686 = vmatpush2.bf16.msra.mxu0 0
      %687 = vmatprep.subr.bf16.mxu0 0
      %688 = vmatpush2.bf16.msra.mxu0 0
      %689 = vmatprep.mubr.bf16.mxu0 0
      %690 = vmatmul.mubr.bf16.gmra.mxu0 %v607
      %v691 = vpop.f32.mrf.mxu0
      %v692 = vadd.f32 %v572, %v691
      %v693 = vpop.f32.mrf.mxu0
      %v694 = vpop.f32.mrf.mxu0
      %v695 = vpop.f32.mrf.mxu0
      %696 = vdwg.mxu0
      %v697 = vlaneseq
      %v698 = vshrl.u32 %v697, 7
      %v699 = vsub.s32 0, %v698
      %v700 = vrot.slane %v316, %v699
      %v701 = vadd.f32 %v692, %v700
      %v703 = vcombine.high %v701, %v701
      %v705 = vunpack.c.l.s4 1966171168
      %v706 = vunpack.c.0.s8 %v705
      %v707 = vlaneseq
      %v708 = vshrl.u32 %v707, 7
      %v709 = vsub.s32 %v706, %v708
      %v710 = vrot.slane %v701, %v709
      %v712 = vunpack.c.l.s4 1966171168
      %v713 = vunpack.c.0.s8 %v712
      %v714 = vlaneseq
      %v715 = vshrl.u32 %v714, 7
      %v716 = vsub.s32 %v713, %v715
      %v717 = vrot.slane %v703, %v716
      %v718 = vcombine.high %v710, %v710
      %v719 = vcombine.high %v717, %v717
      %v721 = vunpack.c.l.s4 1966171168
      %v722 = vunpack.c.0.s8 %v721
      %v723 = vlaneseq
      %v724 = vshrl.u32 %v723, 7
      %v725 = vsub.s32 %v722, %v724
      %v726 = vrot.slane %v710, %v725
      %v728 = vunpack.c.l.s4 1966171168
      %v729 = vunpack.c.0.s8 %v728
      %v730 = vlaneseq
      %v731 = vshrl.u32 %v730, 7
      %v732 = vsub.s32 %v729, %v731
      %v733 = vrot.slane %v717, %v732
      %v735 = vunpack.c.l.s4 1966171168
      %v736 = vunpack.c.0.s8 %v735
      %v737 = vlaneseq
      %v738 = vshrl.u32 %v737, 7
      %v739 = vsub.s32 %v736, %v738
      %v740 = vrot.slane %v718, %v739
      %v742 = vunpack.c.l.s4 1966171168
      %v743 = vunpack.c.0.s8 %v742
      %v744 = vlaneseq
      %v745 = vshrl.u32 %v744, 7
      %v746 = vsub.s32 %v743, %v745
      %v747 = vrot.slane %v719, %v746
      %v748 = vcombine.high %v726, %v726
      %v749 = vcombine.high %v733, %v733
      %v750 = vcombine.high %v740, %v740
      %v751 = vcombine.high %v747, %v747
      %v752 = vlaneseq
      %v753 = vshrl.u32 %v752, 7
      %v754 = vsub.s32 0, %v753
      %v755 = vrot.slane %v726, %v754
      %v756 = vlaneseq
      %v757 = vshrl.u32 %v756, 7
      %v758 = vsub.s32 0, %v757
      %v759 = vrot.slane %v740, %v758
      %v760 = vlaneseq
      %v761 = vshrl.u32 %v760, 7
      %v762 = vsub.s32 0, %v761
      %v763 = vrot.slane %v748, %v762
      %v764 = vlaneseq
      %v765 = vshrl.u32 %v764, 7
      %v766 = vsub.s32 0, %v765
      %v767 = vrot.slane %v750, %v766
      %v768 = vlaneseq
      %v769 = vshrl.u32 %v768, 7
      %v770 = vsub.s32 0, %v769
      %v771 = vrot.slane %v733, %v770
      %v772 = vlaneseq
      %v773 = vshrl.u32 %v772, 7
      %v774 = vsub.s32 0, %v773
      %v775 = vrot.slane %v747, %v774
      %v776 = vlaneseq
      %v777 = vshrl.u32 %v776, 7
      %v778 = vsub.s32 0, %v777
      %v779 = vrot.slane %v749, %v778
      %v780 = vlaneseq
      %v781 = vshrl.u32 %v780, 7
      %v782 = vsub.s32 0, %v781
      %v783 = vrot.slane %v751, %v782
      %v792 = vadd.f32 %v404, %v755
      %v793 = vadd.f32 %v407, %v759
      %v794 = vadd.f32 %v412, %v763
      %v795 = vadd.f32 %v415, %v767
      %v796 = vadd.f32 %v420, %v771
      %v797 = vadd.f32 %v423, %v775
      %v798 = vadd.f32 %v428, %v779
      %v799 = vadd.f32 %v431, %v783
      %v800 = vxor.u32 %v792, 2147483648
      %v801 = vxor.u32 %v793, 2147483648
      %v802 = vxor.u32 %v794, 2147483648
      %v803 = vxor.u32 %v795, 2147483648
      %v804 = vxor.u32 %v796, 2147483648
      %v805 = vxor.u32 %v797, 2147483648
      %v806 = vxor.u32 %v798, 2147483648
      %v807 = vxor.u32 %v799, 2147483648
      %v808 = vmul.f32 %v800, 1.442695
      %v809 = vpow.pop %v808
      %v810 = vmul.f32 %v801, 1.442695
      %v811 = vpow.pop %v810
      %v812 = vmul.f32 %v802, 1.442695
      %v813 = vpow.pop %v812
      %v814 = vmul.f32 %v803, 1.442695
      %v815 = vpow.pop %v814
      %v816 = vmul.f32 %v804, 1.442695
      %v817 = vpow.pop %v816
      %v818 = vmul.f32 %v805, 1.442695
      %v819 = vpow.pop %v818
      %v820 = vmul.f32 %v806, 1.442695
      %v821 = vpow.pop %v820
      %v822 = vmul.f32 %v807, 1.442695
      %v823 = vpow.pop %v822
      %v824 = vadd.f32 %v809, 1.0
      %v825 = vadd.f32 %v811, 1.0
      %v826 = vadd.f32 %v813, 1.0
      %v827 = vadd.f32 %v815, 1.0
      %v828 = vadd.f32 %v817, 1.0
      %v829 = vadd.f32 %v819, 1.0
      %v830 = vadd.f32 %v821, 1.0
      %v831 = vadd.f32 %v823, 1.0
      %v832 = vrcp.pop %v824
      %v833 = vmul.f32 1.0, %v832
      %v834 = vrcp.pop %v825
      %v835 = vmul.f32 1.0, %v834
      %v836 = vrcp.pop %v826
      %v837 = vmul.f32 1.0, %v836
      %v838 = vrcp.pop %v827
      %v839 = vmul.f32 1.0, %v838
      %v840 = vrcp.pop %v828
      %v841 = vmul.f32 1.0, %v840
      %v842 = vrcp.pop %v829
      %v843 = vmul.f32 1.0, %v842
      %v844 = vrcp.pop %v830
      %v845 = vmul.f32 1.0, %v844
      %v846 = vrcp.pop %v831
      %v847 = vmul.f32 1.0, %v846
      %v848 = vlaneseq
      %v849 = vshrl.u32 %v848, 7
      %v850 = vsub.s32 0, %v849
      %v851 = vrot.slane %v315, %v850
      %v852 = vmul.f32 %v833, %v851
      %v853 = vmul.f32 %v835, %v851
      %v854 = vmul.f32 %v837, %v851
      %v855 = vmul.f32 %v839, %v851
      %v856 = vmul.f32 %v841, %v851
      %v857 = vmul.f32 %v843, %v851
      %v858 = vmul.f32 %v845, %v851
      %v859 = vmul.f32 %v847, %v851
      %860 = vadd.xlane.f32.xlu0 %v852
      %v861 = vpop.xlane.xlu0 %860
      %862 = vadd.xlane.f32.xlu0 %v853
      %v863 = vpop.xlane.xlu0 %862
      %864 = vadd.xlane.f32.xlu0 %v854
      %v865 = vpop.xlane.xlu0 %864
      %866 = vadd.xlane.f32.xlu0 %v855
      %v867 = vpop.xlane.xlu0 %866
      %868 = vadd.xlane.f32.xlu0 %v856
      %v869 = vpop.xlane.xlu0 %868
      %870 = vadd.xlane.f32.xlu0 %v857
      %v871 = vpop.xlane.xlu0 %870
      %872 = vadd.xlane.f32.xlu0 %v858
      %v873 = vpop.xlane.xlu0 %872
      %874 = vadd.xlane.f32.xlu0 %v859
      %v875 = vpop.xlane.xlu0 %874
      %v876 = vmul.f32 %v861, %v109
      %v877 = vmul.f32 %v863, %v110
      %v878 = vmul.f32 %v865, %v111
      %v879 = vmul.f32 %v867, %v112
      %v880 = vmul.f32 %v869, %v113
      %v881 = vmul.f32 %v871, %v114
      %v882 = vmul.f32 %v873, %v115
      %v883 = vmul.f32 %v875, %v116
      %v884 = vrot.slane %v876, 4
      %v885 = vadd.f32 %v876, %v884
      %v886 = vrot.slane %v885, 2
      %v887 = vadd.f32 %v885, %v886
      %v888 = vrot.slane %v887, 1
      %v889 = vadd.f32 %v887, %v888
      %v890 = vrot.slane %v877, 4
      %v891 = vadd.f32 %v877, %v890
      %v892 = vrot.slane %v891, 2
      %v893 = vadd.f32 %v891, %v892
      %v894 = vrot.slane %v893, 1
      %v895 = vadd.f32 %v893, %v894
      %v896 = vrot.slane %v878, 4
      %v897 = vadd.f32 %v878, %v896
      %v898 = vrot.slane %v897, 2
      %v899 = vadd.f32 %v897, %v898
      %v900 = vrot.slane %v899, 1
      %v901 = vadd.f32 %v899, %v900
      %v902 = vrot.slane %v879, 4
      %v903 = vadd.f32 %v879, %v902
      %v904 = vrot.slane %v903, 2
      %v905 = vadd.f32 %v903, %v904
      %v906 = vrot.slane %v905, 1
      %v907 = vadd.f32 %v905, %v906
      %v908 = vrot.slane %v880, 4
      %v909 = vadd.f32 %v880, %v908
      %v910 = vrot.slane %v909, 2
      %v911 = vadd.f32 %v909, %v910
      %v912 = vrot.slane %v911, 1
      %v913 = vadd.f32 %v911, %v912
      %v914 = vrot.slane %v881, 4
      %v915 = vadd.f32 %v881, %v914
      %v916 = vrot.slane %v915, 2
      %v917 = vadd.f32 %v915, %v916
      %v918 = vrot.slane %v917, 1
      %v919 = vadd.f32 %v917, %v918
      %v920 = vrot.slane %v882, 4
      %v921 = vadd.f32 %v882, %v920
      %v922 = vrot.slane %v921, 2
      %v923 = vadd.f32 %v921, %v922
      %v924 = vrot.slane %v923, 1
      %v925 = vadd.f32 %v923, %v924
      %v926 = vrot.slane %v883, 4
      %v927 = vadd.f32 %v883, %v926
      %v928 = vrot.slane %v927, 2
      %v929 = vadd.f32 %v927, %v928
      %v930 = vrot.slane %v929, 1
      %v931 = vadd.f32 %v929, %v930
      %v932 = vadd.f32 %v889, %v252
      %v933 = vadd.f32 %v895, %v254
      %v934 = vadd.f32 %v901, %v256
      %v935 = vadd.f32 %v907, %v258
      %v936 = vadd.f32 %v913, %v260
      %v937 = vadd.f32 %v919, %v262
      %v938 = vadd.f32 %v925, %v264
      %v939 = vadd.f32 %v931, %v266
      %v940 = vld [vmem:[#allocation9] sm:$0xf]
      %v941 = vld [vmem:[#allocation9 + $0x8] sm:$0xf]
      %v942 = vld [vmem:[#allocation9 + $0x10] sm:$0xf]
      %v943 = vld [vmem:[#allocation9 + $0x18] sm:$0xf]
      %v944 = vld [vmem:[#allocation9 + $0x20] sm:$0xf]
      %v945 = vld [vmem:[#allocation9 + $0x28] sm:$0xf]
      %v946 = vld [vmem:[#allocation9 + $0x30] sm:$0xf]
      %v947 = vld [vmem:[#allocation9 + $0x38] sm:$0xf]
      %v948 = vld [vmem:[#allocation9 + $0x40] sm:$0xf]
      %v949 = vld [vmem:[#allocation9 + $0x48] sm:$0xf]
      %v950 = vld [vmem:[#allocation9 + $0x50] sm:$0xf]
      %v951 = vld [vmem:[#allocation9 + $0x58] sm:$0xf]
      %v952 = vld [vmem:[#allocation9 + $0x60] sm:$0xf]
      %v953 = vld [vmem:[#allocation9 + $0x68] sm:$0xf]
      %v954 = vld [vmem:[#allocation9 + $0x70] sm:$0xf]
      %v955 = vld [vmem:[#allocation9 + $0x78] sm:$0xf]
      %v956 = vld [vmem:[#allocation9 + $0x4] sm:$0xf]
      %v957 = vld [vmem:[#allocation9 + $0xc] sm:$0xf]
      %v958 = vld [vmem:[#allocation9 + $0x14] sm:$0xf]
      %v959 = vld [vmem:[#allocation9 + $0x1c] sm:$0xf]
      %v960 = vld [vmem:[#allocation9 + $0x24] sm:$0xf]
      %v961 = vld [vmem:[#allocation9 + $0x2c] sm:$0xf]
      %v962 = vld [vmem:[#allocation9 + $0x34] sm:$0xf]
      %v963 = vld [vmem:[#allocation9 + $0x3c] sm:$0xf]
      %v964 = vld [vmem:[#allocation9 + $0x44] sm:$0xf]
      %v965 = vld [vmem:[#allocation9 + $0x4c] sm:$0xf]
      %v966 = vld [vmem:[#allocation9 + $0x54] sm:$0xf]
      %v967 = vld [vmem:[#allocation9 + $0x5c] sm:$0xf]
      %v968 = vld [vmem:[#allocation9 + $0x64] sm:$0xf]
      %v969 = vld [vmem:[#allocation9 + $0x6c] sm:$0xf]
      %v970 = vld [vmem:[#allocation9 + $0x74] sm:$0xf]
      %v971 = vld [vmem:[#allocation9 + $0x7c] sm:$0xf]
      %v972 = vpack.c.bf16 %v932, %v932
      %v973 = vpack.c.bf16 %v933, %v933
      %v974 = vpack.c.bf16 %v934, %v934
      %v975 = vpack.c.bf16 %v935, %v935
      %v976 = vpack.c.bf16 %v936, %v936
      %v977 = vpack.c.bf16 %v937, %v937
      %v978 = vpack.c.bf16 %v938, %v938
      %v979 = vpack.c.bf16 %v939, %v939
      %v980 = vld [vmem:[%s5] sm:$0x1]
      %v981 = vlaneseq
      %v982 = vshrl.u32 %v981, 7
      %v983 = vsub.s32 0, %v982
      %v984 = vrot.slane %v980, %v983
      %v993 = vunpack.c.l.b16 %v972
      %v994 = vunpack.c.l.b16 %v973
      %v995 = vunpack.c.l.b16 %v974
      %v996 = vunpack.c.l.b16 %v975
      %v997 = vunpack.c.l.b16 %v976
      %v998 = vunpack.c.l.b16 %v977
      %v999 = vunpack.c.l.b16 %v978
      %v1000 = vunpack.c.l.b16 %v979
      %v1001 = vrot.slane %v994, 7
      %v1002 = vsel %vm467, %v1001, %v993
      %v1003 = vrot.slane %v995, 6
      %v1004 = vsel %vm470, %v1003, %v1002
      %v1005 = vrot.slane %v996, 5
      %v1006 = vsel %vm473, %v1005, %v1004
      %v1007 = vrot.slane %v997, 4
      %v1008 = vsel %vm476, %v1007, %v1006
      %v1009 = vrot.slane %v998, 3
      %v1010 = vsel %vm479, %v1009, %v1008
      %v1011 = vrot.slane %v999, 2
      %v1012 = vsel %vm482, %v1011, %v1010
      %v1013 = vrot.slane %v1000, 1
      %v1014 = vsel %vm485, %v1013, %v1012
      %v1015 = vpack.c.b16 %v1014, %v1014
      %v1033 = vunpack.c.l.b16 %v940
      %v1034 = vunpack.c.l.b16 %v941
      %v1035 = vunpack.c.l.b16 %v942
      %v1036 = vunpack.c.l.b16 %v943
      %v1037 = vunpack.c.l.b16 %v944
      %v1038 = vunpack.c.l.b16 %v945
      %v1039 = vunpack.c.l.b16 %v946
      %v1040 = vunpack.c.l.b16 %v947
      %v1041 = vunpack.c.l.b16 %v948
      %v1042 = vunpack.c.l.b16 %v949
      %v1043 = vunpack.c.l.b16 %v950
      %v1044 = vunpack.c.l.b16 %v951
      %v1045 = vunpack.c.l.b16 %v952
      %v1046 = vunpack.c.l.b16 %v953
      %v1047 = vunpack.c.l.b16 %v954
      %v1048 = vunpack.c.l.b16 %v955
      %v1049 = vpack.c.b16 %v1034, %v1033
      %v1050 = vpack.c.b16 %v1036, %v1035
      %v1051 = vpack.c.b16 %v1038, %v1037
      %v1052 = vpack.c.b16 %v1040, %v1039
      %v1053 = vpack.c.b16 %v1042, %v1041
      %v1054 = vpack.c.b16 %v1044, %v1043
      %v1055 = vpack.c.b16 %v1046, %v1045
      %v1056 = vpack.c.b16 %v1048, %v1047
      %1065 = vmatprep.subr.bf16.mxu0 0
      %1066 = vmatpush1.bf16.msra.mxu0 %v1056
      %1067 = vmatprep.subr.bf16.mxu0 0
      %1068 = vmatpush1.bf16.msra.mxu0 %v1055
      %1069 = vmatprep.subr.bf16.mxu0 0
      %1070 = vmatpush1.bf16.msra.mxu0 %v1054
      %1071 = vmatprep.subr.bf16.mxu0 0
      %1072 = vmatpush1.bf16.msra.mxu0 %v1053
      %1073 = vmatprep.subr.bf16.mxu0 0
      %1074 = vmatpush1.bf16.msra.mxu0 %v1052
      %1075 = vmatprep.subr.bf16.mxu0 0
      %1076 = vmatpush1.bf16.msra.mxu0 %v1051
      %1077 = vmatprep.subr.bf16.mxu0 0
      %1078 = vmatpush1.bf16.msra.mxu0 %v1050
      %1079 = vmatprep.subr.bf16.mxu0 0
      %1080 = vmatpush1.bf16.msra.mxu0 %v1049
      %1081 = vmatprep.subr.bf16.mxu0 0
      %1082 = vmatpush2.bf16.msra.mxu0 0
      %1083 = vmatprep.subr.bf16.mxu0 0
      %1084 = vmatpush2.bf16.msra.mxu0 0
      %1085 = vmatprep.subr.bf16.mxu0 0
      %1086 = vmatpush2.bf16.msra.mxu0 0
      %1087 = vmatprep.subr.bf16.mxu0 0
      %1088 = vmatpush2.bf16.msra.mxu0 0
      %1089 = vmatprep.subr.bf16.mxu0 0
      %1090 = vmatpush2.bf16.msra.mxu0 0
      %1091 = vmatprep.subr.bf16.mxu0 0
      %1092 = vmatpush2.bf16.msra.mxu0 0
      %1093 = vmatprep.subr.bf16.mxu0 0
      %1094 = vmatpush2.bf16.msra.mxu0 0
      %1095 = vmatprep.subr.bf16.mxu0 0
      %1096 = vmatpush2.bf16.msra.mxu0 0
      %1097 = vmatprep.mubr.bf16.mxu0 0
      %1098 = vmatmul.mubr.bf16.gmra.mxu0 %v1015
      %v1099 = vpop.f32.mrf.mxu0
      %v1100 = vadd.f32 %v984, %v1099
      %v1101 = vpop.f32.mrf.mxu0
      %v1102 = vpop.f32.mrf.mxu0
      %v1103 = vpop.f32.mrf.mxu0
      %1104 = vdwg.mxu0
      %v1105 = vtanh.pop %v1100
      %v1106 = vld [vmem:[%s5 + $0x1] sm:$0x1]
      %v1107 = vlaneseq
      %v1108 = vshrl.u32 %v1107, 7
      %v1109 = vsub.s32 0, %v1108
      %v1110 = vrot.slane %v1106, %v1109
      %v1127 = vunpack.c.l.b16 %v956
      %v1128 = vunpack.c.l.b16 %v957
      %v1129 = vunpack.c.l.b16 %v958
      %v1130 = vunpack.c.l.b16 %v959
      %v1131 = vunpack.c.l.b16 %v960
      %v1132 = vunpack.c.l.b16 %v961
      %v1133 = vunpack.c.l.b16 %v962
      %v1134 = vunpack.c.l.b16 %v963
      %v1135 = vunpack.c.l.b16 %v964
      %v1136 = vunpack.c.l.b16 %v965
      %v1137 = vunpack.c.l.b16 %v966
      %v1138 = vunpack.c.l.b16 %v967
      %v1139 = vunpack.c.l.b16 %v968
      %v1140 = vunpack.c.l.b16 %v969
      %v1141 = vunpack.c.l.b16 %v970
      %v1142 = vunpack.c.l.b16 %v971
      %v1143 = vpack.c.b16 %v1128, %v1127
      %v1144 = vpack.c.b16 %v1130, %v1129
      %v1145 = vpack.c.b16 %v1132, %v1131
      %v1146 = vpack.c.b16 %v1134, %v1133
      %v1147 = vpack.c.b16 %v1136, %v1135
      %v1148 = vpack.c.b16 %v1138, %v1137
      %v1149 = vpack.c.b16 %v1140, %v1139
      %v1150 = vpack.c.b16 %v1142, %v1141
      %1159 = vmatprep.subr.bf16.mxu0 0
      %1160 = vmatpush1.bf16.msra.mxu0 %v1150
      %1161 = vmatprep.subr.bf16.mxu0 0
      %1162 = vmatpush1.bf16.msra.mxu0 %v1149
      %1163 = vmatprep.subr.bf16.mxu0 0
      %1164 = vmatpush1.bf16.msra.mxu0 %v1148
      %1165 = vmatprep.subr.bf16.mxu0 0
      %1166 = vmatpush1.bf16.msra.mxu0 %v1147
      %1167 = vmatprep.subr.bf16.mxu0 0
      %1168 = vmatpush1.bf16.msra.mxu0 %v1146
      %1169 = vmatprep.subr.bf16.mxu0 0
      %1170 = vmatpush1.bf16.msra.mxu0 %v1145
      %1171 = vmatprep.subr.bf16.mxu0 0
      %1172 = vmatpush1.bf16.msra.mxu0 %v1144
      %1173 = vmatprep.subr.bf16.mxu0 0
      %1174 = vmatpush1.bf16.msra.mxu0 %v1143
      %1175 = vmatprep.subr.bf16.mxu0 0
      %1176 = vmatpush2.bf16.msra.mxu0 0
      %1177 = vmatprep.subr.bf16.mxu0 0
      %1178 = vmatpush2.bf16.msra.mxu0 0
      %1179 = vmatprep.subr.bf16.mxu0 0
      %1180 = vmatpush2.bf16.msra.mxu0 0
      %1181 = vmatprep.subr.bf16.mxu0 0
      %1182 = vmatpush2.bf16.msra.mxu0 0
      %1183 = vmatprep.subr.bf16.mxu0 0
      %1184 = vmatpush2.bf16.msra.mxu0 0
      %1185 = vmatprep.subr.bf16.mxu0 0
      %1186 = vmatpush2.bf16.msra.mxu0 0
      %1187 = vmatprep.subr.bf16.mxu0 0
      %1188 = vmatpush2.bf16.msra.mxu0 0
      %1189 = vmatprep.subr.bf16.mxu0 0
      %1190 = vmatpush2.bf16.msra.mxu0 0
      %1191 = vmatprep.mubr.bf16.mxu0 0
      %1192 = vmatmul.mubr.bf16.gmra.mxu0 %v607
      %v1193 = vpop.f32.mrf.mxu0
      %v1194 = vadd.f32 %v1110, %v1193
      %v1195 = vpop.f32.mrf.mxu0
      %v1196 = vpop.f32.mrf.mxu0
      %v1197 = vpop.f32.mrf.mxu0
      %1198 = vdwg.mxu0
      %v1199 = vtanh.pop %v1194
      %v1200 = vmul.f32 %v1105, %v1199
      %1201 = vst [vmem:[#allocation2] sm:$0xff] %v1200
      %v1210 = vrot.slane %v254, 7
      %v1211 = vsel %vm467, %v1210, %v252
      %v1212 = vrot.slane %v256, 6
      %v1213 = vsel %vm470, %v1212, %v1211
      %v1214 = vrot.slane %v258, 5
      %v1215 = vsel %vm473, %v1214, %v1213
      %v1216 = vrot.slane %v260, 4
      %v1217 = vsel %vm476, %v1216, %v1215
      %v1218 = vrot.slane %v262, 3
      %v1219 = vsel %vm479, %v1218, %v1217
      %v1220 = vrot.slane %v264, 2
      %v1221 = vsel %vm482, %v1220, %v1219
      %v1222 = vrot.slane %v266, 1
      %v1223 = vsel %vm485, %v1222, %v1221
      %1225 = vst [vmem:[#allocation13] sm:$0xff] %v1223
    $region53: #{tpu_custom_call.1} parent=1 // pred_fallthru
      _
    %v1226 = vld [vmem:[#allocation2] sm:$0xff]
    %v1227 = vpack.c.bf16 %v1226, %v1226
    %v1228 = vld [vmem:[#allocation11] sm:$0xf]
    %v1229 = vld [vmem:[#allocation11 + $0x4] sm:$0xf]
    %v1230 = vld [vmem:[#allocation11 + $0x8] sm:$0xf]
    %v1231 = vld [vmem:[#allocation11 + $0xc] sm:$0xf]
    %v1232 = vld [vmem:[#allocation11 + $0x10] sm:$0xf]
    %v1233 = vld [vmem:[#allocation11 + $0x14] sm:$0xf]
    %v1234 = vld [vmem:[#allocation11 + $0x18] sm:$0xf]
    %v1235 = vld [vmem:[#allocation11 + $0x1c] sm:$0xf]
    %v1236 = vld [vmem:[#allocation11 + $0x20] sm:$0xf]
    %v1237 = vld [vmem:[#allocation11 + $0x24] sm:$0xf]
    %v1238 = vld [vmem:[#allocation11 + $0x28] sm:$0xf]
    %v1239 = vld [vmem:[#allocation11 + $0x2c] sm:$0xf]
    %v1240 = vld [vmem:[#allocation11 + $0x30] sm:$0xf]
    %v1241 = vld [vmem:[#allocation11 + $0x34] sm:$0xf]
    %v1242 = vld [vmem:[#allocation11 + $0x38] sm:$0xf]
    %v1243 = vld [vmem:[#allocation11 + $0x3c] sm:$0xf]
    %v1260 = vunpack.c.l.b16 %v1228
    %v1261 = vunpack.c.l.b16 %v1229
    %v1262 = vunpack.c.l.b16 %v1230
    %v1263 = vunpack.c.l.b16 %v1231
    %v1264 = vunpack.c.l.b16 %v1232
    %v1265 = vunpack.c.l.b16 %v1233
    %v1266 = vunpack.c.l.b16 %v1234
    %v1267 = vunpack.c.l.b16 %v1235
    %v1268 = vunpack.c.l.b16 %v1236
    %v1269 = vunpack.c.l.b16 %v1237
    %v1270 = vunpack.c.l.b16 %v1238
    %v1271 = vunpack.c.l.b16 %v1239
    %v1272 = vunpack.c.l.b16 %v1240
    %v1273 = vunpack.c.l.b16 %v1241
    %v1274 = vunpack.c.l.b16 %v1242
    %v1275 = vunpack.c.l.b16 %v1243
    %v1276 = vpack.c.b16 %v1261, %v1260
    %v1277 = vpack.c.b16 %v1263, %v1262
    %v1278 = vpack.c.b16 %v1265, %v1264
    %v1279 = vpack.c.b16 %v1267, %v1266
    %v1280 = vpack.c.b16 %v1269, %v1268
    %v1281 = vpack.c.b16 %v1271, %v1270
    %v1282 = vpack.c.b16 %v1273, %v1272
    %v1283 = vpack.c.b16 %v1275, %v1274
    %1292 = vmatprep.subr.bf16.mxu0 0
    %1293 = vmatpush1.bf16.msra.mxu0 %v1283
    %1294 = vmatprep.subr.bf16.mxu0 0
    %1295 = vmatpush1.bf16.msra.mxu0 %v1282
    %1296 = vmatprep.subr.bf16.mxu0 0
    %1297 = vmatpush1.bf16.msra.mxu0 %v1281
    %1298 = vmatprep.subr.bf16.mxu0 0
    %1299 = vmatpush1.bf16.msra.mxu0 %v1280
    %1300 = vmatprep.subr.bf16.mxu0 0
    %1301 = vmatpush1.bf16.msra.mxu0 %v1279
    %1302 = vmatprep.subr.bf16.mxu0 0
    %1303 = vmatpush1.bf16.msra.mxu0 %v1278
    %1304 = vmatprep.subr.bf16.mxu0 0
    %1305 = vmatpush1.bf16.msra.mxu0 %v1277
    %1306 = vmatprep.subr.bf16.mxu0 0
    %1307 = vmatpush1.bf16.msra.mxu0 %v1276
    %1308 = vmatprep.subr.bf16.mxu0 0
    %1309 = vmatpush2.bf16.msra.mxu0 0
    %1310 = vmatprep.subr.bf16.mxu0 0
    %1311 = vmatpush2.bf16.msra.mxu0 0
    %1312 = vmatprep.subr.bf16.mxu0 0
    %1313 = vmatpush2.bf16.msra.mxu0 0
    %1314 = vmatprep.subr.bf16.mxu0 0
    %1315 = vmatpush2.bf16.msra.mxu0 0
    %1316 = vmatprep.subr.bf16.mxu0 0
    %1317 = vmatpush2.bf16.msra.mxu0 0
    %1318 = vmatprep.subr.bf16.mxu0 0
    %1319 = vmatpush2.bf16.msra.mxu0 0
    %1320 = vmatprep.subr.bf16.mxu0 0
    %1321 = vmatpush2.bf16.msra.mxu0 0
    %1322 = vmatprep.subr.bf16.mxu0 0
    %1323 = vmatpush2.bf16.msra.mxu0 0
    %1324 = vmatprep.mubr.bf16.mxu0 0
    %1325 = vmatmul.mubr.bf16.gmra.mxu0 %v1227
    %v1326 = vpop.f32.mrf.mxu0
    %v1327 = vadd.f32 0.0, %v1326
    %v1328 = vpop.f32.mrf.mxu0
    %v1329 = vpop.f32.mrf.mxu0
    %v1330 = vpop.f32.mrf.mxu0
    %1331 = vdwg.mxu0
    %1332 = vst [vmem:[#allocation12] sm:$0xff] %v1327
    // Predicated region
    $region54: #{tpu_custom_call.1} parent=1 // pred_check
      _
    $region55: #{tpu_custom_call.1} parent=1 // pred_check_branch
      %1334 = sbr.rel (0) target = $region57
    $region56: #{tpu_custom_call.1} parent=1 // pred_region
      %s1336 = ssub.s32 128, 128
      %1337 = vsyncadd [#allocation5], %s1336
      %s1339 = sshll.u32 [#allocation12], 4
      %s1340 = int_to_ptr.vmem [resolvable:$true] %s1339
      %1342 = dma.vmem_to_hbm [thread:$0]  %s1340, 128, %s7, [#allocation5]
    $region57: #{tpu_custom_call.1} parent=1 // pred_fallthru
      _
    // Predicated region
    $region58: #{tpu_custom_call.1} parent=1 // pred_check
      _
    $region59: #{tpu_custom_call.1} parent=1 // pred_check_branch
      %1344 = sbr.rel (0) target = $region61
    $region60: #{tpu_custom_call.1} parent=1 // pred_region
      %s1346 = ssub.s32 128, 128
      %1347 = vsyncadd [#allocation14], %s1346
      %s1349 = sshll.u32 [#allocation13], 4
      %s1350 = int_to_ptr.vmem [resolvable:$true] %s1349
      %1352 = dma.vmem_to_hbm [thread:$0]  %s1350, 128, %s8, [#allocation14]
    $region61: #{tpu_custom_call.1} parent=1 // pred_fallthru
      _
    // Predicated region
    $region62: #{tpu_custom_call.1} parent=1 // pred_check
      _
    $region63: #{tpu_custom_call.1} parent=1 // pred_check_branch
      %1354 = sbr.rel (0) target = $region65
    $region64: #{tpu_custom_call.1} parent=1 // pred_region
      %1355 = dma.done [#allocation5], 128
    $region65: #{tpu_custom_call.1} parent=1 // pred_fallthru
      _
    // Predicated region
    $region66: #{tpu_custom_call.1} parent=1 // pred_check
      _
    $region67: #{tpu_custom_call.1} parent=1 // pred_check_branch
      %1357 = sbr.rel (0) target = $region69
    $region68: #{tpu_custom_call.1} parent=1 // pred_region
      %1358 = dma.done [#allocation14], 128
    $region69: #{tpu_custom_call.1} parent=1 // pred_fallthru
      _
    %1359 = vsyncpa [#allocation4], 1
    %1360 = vsyncpa [#allocation7], 1
    %1361 = vsyncpa [#allocation10], 1
    %1362 = vsyncpa [#allocation5], 1
    %1363 = vsyncpa [#allocation14], 1

</llo_original>
